<compile_context>
chip_gen: v7x
topology: tpu7x:2x2x1
jax: 0.10.0
libtpu: 0.0.40
codegen_flags: <defaults>
</compile_context>

<pallas_src>
import jax
import jax.numpy as jnp
from jax.experimental import pallas as pl
from jax.experimental.pallas import tpu as pltpu

LANES = 128                # vreg lane width (last dim of every tile)
TARGET_TILE_ROWS = 4096    # (4096, 128) f32 tile = 2 MiB/buffer, 8 MiB live total


def linear_kernel(x_ref, w_ref, b_ref, o_ref):
    # x_ref / o_ref: (tm, 128) VMEM tiles; w_ref / b_ref: (1,) scalars in SMEM.
    w = w_ref[0]
    b = b_ref[0]
    # Exact semantics of nn.Linear(1, 1): y = x @ W^T + b == x * w + b.
    o_ref[...] = x_ref[...] * w + b


def _tile_rows(rows: int) -> tuple[int, int]:
    """Pick (tile_rows, grid_steps) for a (rows, 128) slab."""
    if rows <= 16:
        # Single full-array block: block_shape == array shape, so the
        # (8, 128) divisibility rule does not apply.
        return rows, 1
    # Aim for >= 2 grid steps (keeps both v7x TensorCores busy) while
    # capping each buffer at ~2 MiB — safe on v5e/v6e/v7x VMEM budgets.
    half = (((rows + 1) // 2) + 7) // 8 * 8     # multiple of 8 sublanes
    tm = min(TARGET_TILE_ROWS, half)
    return tm, pl.cdiv(rows, tm)


def linear_forward(x, weight, bias):
    """x: (N, 1); weight: (1, 1); bias: (1,)  ->  (N, 1)."""
    n, in_f = x.shape
    assert in_f == 1 and weight.shape == (1, 1) and bias.shape == (1,)
    dtype = x.dtype

    rows = pl.cdiv(n, LANES)
    aligned = (n % LANES) == 0

    # ---- Lane-dense re-layout (wrapper plumbing, not compute) -------------
    if aligned:
        x2d = x.reshape(rows, LANES)                       # zero-copy view
    else:
        x_flat = jnp.pad(x.reshape(-1), (0, rows * LANES - n))
        x2d = x_flat.reshape(rows, LANES)                  # pad to lane edge only

    tm, steps = _tile_rows(rows)
    itemsize = x2d.dtype.itemsize
    tile_bytes = tm * LANES * itemsize
    # Double-buffered input + output plus headroom; with tm<=4096/f32 this
    # stays at 16 MiB, within every generation's scoped-VMEM budget.
    vmem_limit = min(128 * 1024 * 1024,
                     max(16 * 1024 * 1024, 4 * tile_bytes + 4 * 1024 * 1024))

    y2d = pl.pallas_call(
        linear_kernel,
        out_shape=jax.ShapeDtypeStruct((rows, LANES), dtype),
        grid=(steps,),
        in_specs=[
            pl.BlockSpec((tm, LANES), lambda i: (i, 0)),        # pipelined tiles
            pl.BlockSpec(memory_space=pltpu.MemorySpace.SMEM),  # w scalar
            pl.BlockSpec(memory_space=pltpu.MemorySpace.SMEM),  # b scalar
        ],
        out_specs=pl.BlockSpec((tm, LANES), lambda i: (i, 0)),
        compiler_params=pltpu.CompilerParams(
            dimension_semantics=("parallel",),                  # megacore on v7x
            vmem_limit_bytes=vmem_limit,
        ),
        cost_estimate=pl.CostEstimate(
            flops=2 * rows * LANES,                             # one FMA / element
            transcendentals=0,
            bytes_accessed=2 * rows * LANES * itemsize,         # read + write
        ),
    )(x2d, weight.reshape(1), bias.reshape(1))

    if aligned:
        return y2d.reshape(n, 1)                                # no trim needed
    # Padded tail lanes hold w*0 + b = b; slice them off before returning.
    return y2d.reshape(-1)[:n].reshape(n, 1)


if __name__ == "__main__":
    key = jax.random.PRNGKey(0)
    k_w, k_b, k_big = jax.random.split(key, 3)

    # Deterministic parameters (same shapes as torch.nn.Linear(1, 1)).
    weight = jax.random.uniform(k_w, (1, 1), jnp.float32, -1.0, 1.0)
    bias = jax.random.uniform(k_b, (1,), jnp.float32, -1.0, 1.0)

    # Module-consistent small input: x = torch.tensor([[1.], [2.], [3.]]).
    x = jnp.array([[1.0], [2.0], [3.0]], dtype=jnp.float32)
    y = jax.block_until_ready(linear_forward(x, weight, bias))
    assert y.shape == (3, 1)
    assert jnp.allclose(y, x @ weight.T + bias, atol=1e-6, rtol=1e-6)

    # Aligned fast path (no pad / no trim) with a multi-step grid.
    x_al = jax.random.normal(k_big, (12288, 1), jnp.float32)   # 96 rows of 128
    y_al = jax.block_until_ready(linear_forward(x_al, weight, bias))
    assert jnp.allclose(y_al, x_al @ weight.T + bias, atol=1e-6, rtol=1e-6)

    # Ragged path (pad only to the 128-lane boundary, masked last block).
    x_rg = jax.random.normal(k_big, (5000, 1), jnp.float32)
    y_rg = jax.block_until_ready(linear_forward(x_rg, weight, bias))
    assert jnp.allclose(y_rg, x_rg @ weight.T + bias, atol=1e-6, rtol=1e-6)

    print("KERNEL_OK")
</pallas_src>

<mosaic_0001>
module attributes {stable_mosaic.version = 11 : i64} {
  func.func @linear_kernel(%arg0: i32, %arg1: memref<1x128xf32, #tpu.memory_space<vmem>>, %arg2: memref<1xf32, #tpu.memory_space<smem>>, %arg3: memref<1xf32, #tpu.memory_space<smem>>, %arg4: memref<1x128xf32, #tpu.memory_space<vmem>>) attributes {dimension_semantics = [#tpu.dimension_semantics<parallel>], iteration_bounds = array<i64: 1>, scalar_prefetch = 0 : i64, scratch_operands = 0 : i64, tpu.core_type = #tpu.core_type<tc>, window_params = [{transform_indices = @transform_0, window_bounds = array<i64: 1, 128>}, {transform_indices = @transform_1, window_bounds = array<i64: 1>}, {transform_indices = @transform_2, window_bounds = array<i64: 1>}, {transform_indices = @transform_3, window_bounds = array<i64: 1, 128>}]} {
    %c0 = arith.constant 0 : index
    %0 = memref.load %arg2[%c0] : memref<1xf32, #tpu.memory_space<smem>>
    %c0_0 = arith.constant 0 : index
    %1 = memref.load %arg3[%c0_0] : memref<1xf32, #tpu.memory_space<smem>>
    %c0_1 = arith.constant 0 : index
    %c0_2 = arith.constant 0 : index
    %2 = vector.load %arg1[%c0_1, %c0_2] : memref<1x128xf32, #tpu.memory_space<vmem>>, vector<1x128xf32>
    %3 = vector.broadcast %0 : f32 to vector<1x128xf32>
    %4 = arith.mulf %2, %3 : vector<1x128xf32>
    %5 = vector.broadcast %1 : f32 to vector<1x128xf32>
    %6 = arith.addf %4, %5 : vector<1x128xf32>
    %c0_3 = arith.constant 0 : index
    %c0_4 = arith.constant 0 : index
    %7 = vector.load %arg4[%c0_3, %c0_4] : memref<1x128xf32, #tpu.memory_space<vmem>>, vector<1x128xf32>
    tpu.vector_store %arg4[%c0_3, %c0_4], %6 {strides = array<i32>} : memref<1x128xf32, #tpu.memory_space<vmem>>, vector<1x128xf32>,
    return
  }
  func.func @transform_0(%arg0: i32) -> (i32, i32) {
    %c0_i32 = arith.constant 0 : i32
    %c0_i32_0 = arith.constant 0 : i32
    return %arg0, %c0_i32 : i32, i32
  }
  func.func @transform_1(%arg0: i32) -> i32 {
    %c0_i32 = arith.constant 0 : i32
    %c0_i32_0 = arith.constant 0 : i32
    return %c0_i32 : i32
  }
  func.func @transform_2(%arg0: i32) -> i32 {
    %c0_i32 = arith.constant 0 : i32
    %c0_i32_0 = arith.constant 0 : i32
    return %c0_i32 : i32
  }
  func.func @transform_3(%arg0: i32) -> (i32, i32) {
    %c0_i32 = arith.constant 0 : i32
    %c0_i32_0 = arith.constant 0 : i32
    return %arg0, %c0_i32 : i32, i32
  }
}

</mosaic_0001>

<llo_original>
// kernel: tpu_custom_call.1
$region0: #{tpu_custom_call.1}
  #allocation0 [shape = 'u32[]', space=smem, size = 0x4, offset = 0x4, fixed_abs, tag = 'smem constant byte address 0x4 - core index']
  #allocation1 [shape = 'u32[144,128]{1,0:T(1,128)}', space=vmem, size = 0x12000, scoped, tag = 'internal scratch']
  #allocation2 [shape = 'f32[1]{0:T(128)S(6)}', space=smem, size = 0x200, scoped, tag = 'scoped memory for tpu_custom_call.1']
  #allocation3 [shape = 'f32[1]{0:T(128)S(6)}', space=smem, size = 0x200, scoped, tag = 'scoped memory for tpu_custom_call.1']
  %s0 = inlined_call_operand.vmem [shape: f32[1,128], index: 0, kind: input, shape index: {}]
  %s1 = inlined_call_operand.<no memory space> [shape: f32[1], index: 1, kind: input, shape index: {}]
  %s2 = inlined_call_operand.<no memory space> [shape: f32[1], index: 2, kind: input, shape index: {}]
  %s3 = inlined_call_operand.hbm [shape: f32[1,128], index: 3, kind: output, shape index: {}]
  %s4 = sld [smem:[#allocation0]]
  $region22: #{tpu_custom_call.1} parent=0
    _
  %s6 = ssub.s32 1, %s4
  %s7 = scalar_select 0, %s6, %s4
  %8 = sst [smem:[#allocation2]] %s1
  %9 = sst [smem:[#allocation3]] %s2
  $region1: #{tpu_custom_call.1} parent=0
    #allocation4 [shape = 'u8[512]{0}', space=vmem, size = 0x400, scoped, tag = 'output window, operand 0, single buffered']
    #allocation5 [shape = 's32[1]{0}', space=sflag, size = 0x4, scoped, tag = 'scoped memory for tpu_custom_call.1']
    %10 = vsyncpa [#allocation5], 0
    // Predicated region
    $region2: #{tpu_custom_call.1} parent=1 // pred_check
      _
    $region3: #{tpu_custom_call.1} parent=1 // pred_check_branch
      %12 = sbr.rel (0) target = $region5
    $region4: #{tpu_custom_call.1} parent=1 // pred_region
      _
    $region5: #{tpu_custom_call.1} parent=1 // pred_fallthru
      _
    // Predicated region
    $region6: #{tpu_custom_call.1} parent=1 // pred_check
      _
    $region7: #{tpu_custom_call.1} parent=1 // pred_check_branch
      %14 = sbr.rel (0) target = $region9
    $region8: #{tpu_custom_call.1} parent=1 // pred_region
      _
    $region9: #{tpu_custom_call.1} parent=1 // pred_fallthru
      _
    // Predicated region
    $region10: #{tpu_custom_call.1} parent=1 // pred_check
      _
    $region11: #{tpu_custom_call.1} parent=1 // pred_check_branch
      %16 = sbr.rel (0) target = $region13
    $region12: #{tpu_custom_call.1} parent=1 // pred_region
      _
    $region13: #{tpu_custom_call.1} parent=1 // pred_fallthru
      _
    %s17 = sld [smem:[#allocation2]]
    %s18 = sld [smem:[#allocation3]]
    %v19 = vld [vmem:[%s0] sm:$0x1]
    %v20 = vstv %s17
    %v21 = vmul.f32 %v19, %v20
    %v22 = vstv %s18
    %v23 = vadd.f32 %v21, %v22
    %24 = vst [vmem:[#allocation4] sm:$0x1] %v23
    // Predicated region
    $region14: #{tpu_custom_call.1} parent=1 // pred_check
      _
    $region15: #{tpu_custom_call.1} parent=1 // pred_check_branch
      %26 = sbr.rel (0) target = $region17
    $region16: #{tpu_custom_call.1} parent=1 // pred_region
      %s28 = ssub.s32 16, 16
      %29 = vsyncadd [#allocation5], %s28
      %s31 = sshll.u32 [#allocation4], 4
      %s32 = int_to_ptr.vmem [resolvable:$true] %s31
      %34 = dma.vmem_to_hbm [thread:$0]  %s32, 16, %s3, [#allocation5]
    $region17: #{tpu_custom_call.1} parent=1 // pred_fallthru
      _
    // Predicated region
    $region18: #{tpu_custom_call.1} parent=1 // pred_check
      _
    $region19: #{tpu_custom_call.1} parent=1 // pred_check_branch
      %36 = sbr.rel (0) target = $region21
    $region20: #{tpu_custom_call.1} parent=1 // pred_region
      %37 = dma.done [#allocation5], 16
    $region21: #{tpu_custom_call.1} parent=1 // pred_fallthru
      _
    %38 = vsyncpa [#allocation5], 1

</llo_original>
